<compile_context>
chip_gen: v7x
topology: tpu7x:2x2x1
jax: 0.10.0
libtpu: 0.0.40
codegen_flags: <defaults>
</compile_context>

<pallas_src>
import math

import jax
import jax.numpy as jnp
from jax.experimental import pallas as pl
from jax.experimental.pallas import tpu as pltpu


# ----------------------------------------------------------------------------
# Kernels
# ----------------------------------------------------------------------------

def _pos_enc_kernel_natural(consts_ref, xe_ref, ye_ref, x_ref, o_ref):
    """Natural [.., W, D] layout (lane-dense when D is a multiple of 128)."""
    # consts_ref : (3, D) f32 rows = [freq_x, freq_y, phase_offset]
    # xe_ref/ye_ref : (1, tile_h, W) f32 precomputed (normalized) embeds
    # x_ref/o_ref   : (1, tile_h, W, D)
    fx = consts_ref[0:1, :][None]     # (1, 1, D)
    fy = consts_ref[1:2, :][None]     # (1, 1, D)
    off = consts_ref[2:3, :][None]    # (1, 1, D)
    xe = xe_ref[0]                    # (tile_h, W)
    ye = ye_ref[0]                    # (tile_h, W)
    phase = xe[:, :, None] * fx + ye[:, :, None] * fy + off      # (tile_h, W, D)
    o_ref[0] = (x_ref[0].astype(jnp.float32) + jnp.sin(phase)).astype(o_ref.dtype)


def _pos_enc_kernel_flat(off_ref, ex_ref, ey_ref, xe_ref, ye_ref, x_ref, o_ref):
    """Lane-dense [.., W*D] layout for small D; embed expansion runs on the MXU."""
    # off_ref : (1, W*D) f32 tiled phase offsets
    # ex_ref  : (W, W*D) f32 with ex[w, w'*D+d] = (w == w') * freq_x[d]
    # ey_ref  : (W, W*D) f32 with ey[w, w'*D+d] = (w == w') * freq_y[d]
    # xe_ref/ye_ref : (1, tile_h, W) f32
    # x_ref/o_ref   : (1, tile_h, W*D)
    xe = xe_ref[0]                    # (tile_h, W)
    ye = ye_ref[0]                    # (tile_h, W)
    phase = (jnp.dot(xe, ex_ref[...], preferred_element_type=jnp.float32)
             + jnp.dot(ye, ey_ref[...], preferred_element_type=jnp.float32)
             + off_ref[...])                                      # (tile_h, W*D)
    o_ref[0] = (x_ref[0].astype(jnp.float32) + jnp.sin(phase)).astype(o_ref.dtype)


# ----------------------------------------------------------------------------
# Wrapper helpers
# ----------------------------------------------------------------------------

def _vmem_limit_bytes():
    """Generation-aware VMEM ceiling (v7x has 64 MiB per TC, v5e/v6e 128 MiB)."""
    try:
        cap = int(getattr(pltpu.get_tpu_info(), "vmem_capacity_bytes"))
    except Exception:
        cap = 128 * 1024 * 1024
    if cap <= 64 * 1024 * 1024:          # v7x-class
        return 44 * 1024 * 1024
    return 64 * 1024 * 1024              # v5e / v6e-class


def _pick_tile_h(H, W, D, x_itemsize, budget_bytes):
    """Largest row-tile whose per-step working set fits the budget.

    Per H-row: double-buffered x-in + out blocks plus ~3 f32 [W, D]
    intermediates (f32 upcast / phase / sin), plus the tiny f32 embed rows.
    """
    per_row = W * D * (4 * x_itemsize + 3 * 4) + 4 * 4 * W
    tile = max(1, int(budget_bytes) // max(per_row, 1))
    if tile >= H:
        return H
    # (8, 128) rule: tile_h is the second-minor dim of the embed / flat blocks,
    # so it must be a multiple of 8 (or equal to H).
    return min(max(8, (tile // 8) * 8), H)


def img_pos_enc(x, mask, *, temperature=10000.0, normalize=False, tile_h=None):
    """x: [B, H, W, D] float, mask: [B, H, W] bool (True = padded).

    Returns x + 2D sinusoidal positional encoding (ImgPosEnc forward).
    """
    B, H, W, D = x.shape
    assert D % 4 == 0, "d_model must be divisible by 4 for 2D encoding"
    assert mask.shape == (B, H, W)

    # torch promotes x + float32 pos; do the same (f32 for f32/bf16 inputs).
    out_dtype = jnp.promote_types(x.dtype, jnp.float32)

    # ---- precompute embeds in the wrapper (tiny [B, H, W] f32 arrays) -------
    not_mask = jnp.logical_not(mask).astype(jnp.float32)
    y_embed = jnp.cumsum(not_mask, axis=1)
    x_embed = jnp.cumsum(not_mask, axis=2)
    if normalize:
        eps = 1e-6
        y_embed = y_embed / (y_embed[:, -1:, :] + eps) * (2.0 * math.pi)
        x_embed = x_embed / (x_embed[:, :, -1:] + eps) * (2.0 * math.pi)

    # ---- frequency / phase-offset rows (module channel order:
    #      [sin(x f), cos(x f), sin(y f), cos(y f)], cos = sin(. + pi/2)) -----
    quarter = D // 4
    dim_t = jnp.arange(quarter, dtype=jnp.float32)
    inv_freq = 1.0 / (float(temperature) ** (dim_t / float(quarter)))
    zeros = jnp.zeros((quarter,), jnp.float32)
    halfpi = jnp.full((quarter,), 0.5 * math.pi, jnp.float32)
    freq_x = jnp.concatenate([inv_freq, inv_freq, zeros, zeros])   # (D,)
    freq_y = jnp.concatenate([zeros, zeros, inv_freq, inv_freq])   # (D,)
    offset = jnp.concatenate([zeros, halfpi, zeros, halfpi])       # (D,)

    # ---- tiling --------------------------------------------------------------
    vmem_limit = _vmem_limit_bytes()
    if tile_h is None:
        tile_h = _pick_tile_h(
            H, W, D, jnp.dtype(x.dtype).itemsize,
            budget_bytes=min(24 * 1024 * 1024, vmem_limit // 2))
    tile_h = int(tile_h)
    if not (tile_h == H or (tile_h % 8 == 0 and 0 < tile_h <= H)):
        raise ValueError(f"tile_h={tile_h} must equal H or be a multiple of 8 <= H={H}")

    grid = (B, pl.cdiv(H, tile_h))
    cparams = pltpu.CompilerParams(
        dimension_semantics=("parallel", "parallel"),
        vmem_limit_bytes=vmem_limit,
    )

    # Lane-dense flattened path when D is not a multiple of 128 and the
    # (W, W*D) expansion matrices stay small.
    # TODO(synk): for D < 128 with very large W the expansion matrices do not
    # fit; the fallback below is the (lane-sparse) natural layout.
    expand_bytes = 2 * W * (W * D) * 4
    use_flat = (D % 128 != 0) and (expand_bytes <= 4 * 1024 * 1024)

    if use_flat:
        eye_w = jnp.eye(W, dtype=jnp.float32)                       # (W, W)
        ex = (eye_w[:, :, None] * freq_x[None, None, :]).reshape(W, W * D)
        ey = (eye_w[:, :, None] * freq_y[None, None, :]).reshape(W, W * D)
        off_wd = jnp.tile(offset[None, :], (1, W))                  # (1, W*D)
        x_flat = x.reshape(B, H, W * D)

        aliases = {5: 0} if x.dtype == out_dtype else {}
        out = pl.pallas_call(
            _pos_enc_kernel_flat,
            out_shape=jax.ShapeDtypeStruct((B, H, W * D), out_dtype),
            grid=grid,
            in_specs=[
                pl.BlockSpec((1, W * D), lambda b, t: (0, 0)),         # offsets
                pl.BlockSpec((W, W * D), lambda b, t: (0, 0)),         # EX
                pl.BlockSpec((W, W * D), lambda b, t: (0, 0)),         # EY
                pl.BlockSpec((1, tile_h, W), lambda b, t: (b, t, 0)),  # x_embed
                pl.BlockSpec((1, tile_h, W), lambda b, t: (b, t, 0)),  # y_embed
                pl.BlockSpec((1, tile_h, W * D), lambda b, t: (b, t, 0)),  # x
            ],
            out_specs=pl.BlockSpec((1, tile_h, W * D), lambda b, t: (b, t, 0)),
            compiler_params=cparams,
            input_output_aliases=aliases,
        )(off_wd, ex, ey, x_embed, y_embed, x_flat)
        return out.reshape(B, H, W, D)

    # Natural layout path (lane-dense whenever D % 128 == 0).
    consts = jnp.stack([freq_x, freq_y, offset], axis=0)            # (3, D)
    aliases = {3: 0} if x.dtype == out_dtype else {}
    return pl.pallas_call(
        _pos_enc_kernel_natural,
        out_shape=jax.ShapeDtypeStruct((B, H, W, D), out_dtype),
        grid=grid,
        in_specs=[
            pl.BlockSpec((3, D), lambda b, t: (0, 0)),               # constants
            pl.BlockSpec((1, tile_h, W), lambda b, t: (b, t, 0)),    # x_embed
            pl.BlockSpec((1, tile_h, W), lambda b, t: (b, t, 0)),    # y_embed
            pl.BlockSpec((1, tile_h, W, D), lambda b, t: (b, t, 0, 0)),  # x
        ],
        out_specs=pl.BlockSpec((1, tile_h, W, D), lambda b, t: (b, t, 0, 0)),
        compiler_params=cparams,
        input_output_aliases=aliases,
    )(consts, x_embed, y_embed, x)


# ----------------------------------------------------------------------------
# Pure-JAX reference (mirrors the PyTorch forward exactly)
# ----------------------------------------------------------------------------

def _reference(x, mask, *, temperature=10000.0, normalize=False):
    not_mask = (~mask).astype(jnp.float32)
    y_embed = jnp.cumsum(not_mask, axis=1)
    x_embed = jnp.cumsum(not_mask, axis=2)
    if normalize:
        eps = 1e-6
        y_embed = y_embed / (y_embed[:, -1:, :] + eps) * 2 * math.pi
        x_embed = x_embed / (x_embed[:, :, -1:] + eps) * 2 * math.pi
    d_model = x.shape[-1]
    quarter = d_model // 4
    dim_t = jnp.arange(quarter, dtype=jnp.float32)
    inv_freq = 1.0 / (temperature ** (dim_t / quarter))
    pos_x = x_embed[..., None] * inv_freq
    pos_y = y_embed[..., None] * inv_freq
    pos_x = jnp.concatenate([jnp.sin(pos_x), jnp.cos(pos_x)], axis=-1)
    pos_y = jnp.concatenate([jnp.sin(pos_y), jnp.cos(pos_y)], axis=-1)
    pos = jnp.concatenate([pos_x, pos_y], axis=-1)
    return x + pos


if __name__ == "__main__":
    key = jax.random.PRNGKey(0)
    kx, km, kx2, km2, kx4 = jax.random.split(key, 5)

    # Case 1: d_model = 32 (< 128) -> lane-dense flattened (MXU-expansion) path.
    B, H, W, D = 2, 8, 16, 32
    x = jax.random.normal(kx, (B, H, W, D), dtype=jnp.float32)
    mask = jax.random.uniform(km, (B, H, W)) > 0.8           # True = padded

    ref = _reference(x, mask)
    out = jax.block_until_ready(img_pos_enc(x + 0.0, mask))  # fresh buffer (aliasing)
    assert out.shape == ref.shape and out.dtype == ref.dtype
    assert jnp.allclose(out, ref, atol=1e-4, rtol=1e-4), "mismatch (flat path)"

    # Case 2: multi-tile grid over H (grid = (B, 2)).
    H2 = 16
    x2 = jax.random.normal(kx2, (B, H2, W, D), dtype=jnp.float32)
    mask2 = jax.random.uniform(km2, (B, H2, W)) > 0.8
    ref2 = _reference(x2, mask2)
    out2 = jax.block_until_ready(img_pos_enc(x2 + 0.0, mask2, tile_h=8))
    assert jnp.allclose(out2, ref2, atol=1e-4, rtol=1e-4), "mismatch (H-tiled)"

    # Case 3: normalize=True path.
    ref3 = _reference(x, mask, normalize=True)
    out3 = jax.block_until_ready(img_pos_enc(x + 0.0, mask, normalize=True))
    assert jnp.allclose(out3, ref3, atol=1e-4, rtol=1e-4), "mismatch (normalize)"

    # Case 4: d_model = 128 -> natural lane-dense path.
    D4 = 128
    x4 = jax.random.normal(kx4, (B, H, W, D4), dtype=jnp.float32)
    ref4 = _reference(x4, mask)
    out4 = jax.block_until_ready(img_pos_enc(x4 + 0.0, mask))
    assert jnp.allclose(out4, ref4, atol=1e-4, rtol=1e-4), "mismatch (natural path)"

    print("KERNEL_OK")
</pallas_src>

<mosaic_0001>
module attributes {stable_mosaic.version = 11 : i64} {
  func.func @_pos_enc_kernel_flat(%arg0: i32, %arg1: i32, %arg2: memref<1x512xf32, #tpu.memory_space<vmem>>, %arg3: memref<16x512xf32, #tpu.memory_space<vmem>>, %arg4: memref<16x512xf32, #tpu.memory_space<vmem>>, %arg5: memref<1x8x16xf32, #tpu.memory_space<vmem>>, %arg6: memref<1x8x16xf32, #tpu.memory_space<vmem>>, %arg7: memref<1x8x512xf32, #tpu.memory_space<vmem>>, %arg8: memref<1x8x512xf32, #tpu.memory_space<vmem>>) attributes {dimension_semantics = [#tpu.dimension_semantics<parallel>, #tpu.dimension_semantics<parallel>], iteration_bounds = array<i64: 2, 1>, scalar_prefetch = 0 : i64, scratch_operands = 0 : i64, tpu.core_type = #tpu.core_type<tc>, window_params = [{pipeline_mode = #tpu.pipeline_mode<synchronous>, transform_indices = @transform_0, window_bounds = array<i64: 1, 512>}, {pipeline_mode = #tpu.pipeline_mode<synchronous>, transform_indices = @transform_1, window_bounds = array<i64: 16, 512>}, {pipeline_mode = #tpu.pipeline_mode<synchronous>, transform_indices = @transform_2, window_bounds = array<i64: 16, 512>}, {transform_indices = @transform_3, window_bounds = array<i64: 1, 8, 16>}, {transform_indices = @transform_4, window_bounds = array<i64: 1, 8, 16>}, {transform_indices = @transform_5, window_bounds = array<i64: 1, 8, 512>}, {transform_indices = @transform_6, window_bounds = array<i64: 1, 8, 512>}]} {
    %c0 = arith.constant 0 : index
    %c0_0 = arith.constant 0 : index
    %c0_1 = arith.constant 0 : index
    %0 = vector.load %arg5[%c0, %c0_0, %c0_1] : memref<1x8x16xf32, #tpu.memory_space<vmem>>, vector<1x8x16xf32>
    %1 = vector.shape_cast %0 : vector<1x8x16xf32> to vector<8x16xf32>
    %c0_2 = arith.constant 0 : index
    %c0_3 = arith.constant 0 : index
    %c0_4 = arith.constant 0 : index
    %2 = vector.load %arg6[%c0_2, %c0_3, %c0_4] : memref<1x8x16xf32, #tpu.memory_space<vmem>>, vector<1x8x16xf32>
    %3 = vector.shape_cast %2 : vector<1x8x16xf32> to vector<8x16xf32>
    %c0_5 = arith.constant 0 : index
    %c0_6 = arith.constant 0 : index
    %4 = vector.load %arg3[%c0_5, %c0_6] : memref<16x512xf32, #tpu.memory_space<vmem>>, vector<16x512xf32>
    %cst = arith.constant dense<0.000000e+00> : vector<8x512xf32>
    %5 = tpu.matmul %1, %4, %cst {dimension_numbers = #tpu.dot_dimension_numbers<[1], [0], [0], [1], [0, 0, 1, 1], [], []>} : vector<8x16xf32>, vector<16x512xf32>, vector<8x512xf32> -> vector<8x512xf32>
    %c0_7 = arith.constant 0 : index
    %c0_8 = arith.constant 0 : index
    %6 = vector.load %arg4[%c0_7, %c0_8] : memref<16x512xf32, #tpu.memory_space<vmem>>, vector<16x512xf32>
    %cst_9 = arith.constant dense<0.000000e+00> : vector<8x512xf32>
    %7 = tpu.matmul %3, %6, %cst_9 {dimension_numbers = #tpu.dot_dimension_numbers<[1], [0], [0], [1], [0, 0, 1, 1], [], []>} : vector<8x16xf32>, vector<16x512xf32>, vector<8x512xf32> -> vector<8x512xf32>
    %8 = arith.addf %5, %7 : vector<8x512xf32>
    %c0_10 = arith.constant 0 : index
    %c0_11 = arith.constant 0 : index
    %9 = vector.load %arg2[%c0_10, %c0_11] : memref<1x512xf32, #tpu.memory_space<vmem>>, vector<1x512xf32>
    %10 = vector.broadcast %9 : vector<1x512xf32> to vector<8x512xf32>
    %11 = arith.addf %8, %10 : vector<8x512xf32>
    %c0_12 = arith.constant 0 : index
    %c0_13 = arith.constant 0 : index
    %c0_14 = arith.constant 0 : index
    %12 = vector.load %arg7[%c0_12, %c0_13, %c0_14] : memref<1x8x512xf32, #tpu.memory_space<vmem>>, vector<1x8x512xf32>
    %13 = vector.shape_cast %12 : vector<1x8x512xf32> to vector<8x512xf32>
    %14 = math.sin %11 : vector<8x512xf32>
    %15 = arith.addf %13, %14 : vector<8x512xf32>
    %c0_15 = arith.constant 0 : index
    %c0_16 = arith.constant 0 : index
    %c0_17 = arith.constant 0 : index
    %16 = vector.load %arg8[%c0_15, %c0_16, %c0_17] : memref<1x8x512xf32, #tpu.memory_space<vmem>>, vector<1x8x512xf32>
    %17 = vector.shape_cast %16 : vector<1x8x512xf32> to vector<8x512xf32>
    %18 = vector.shape_cast %15 : vector<8x512xf32> to vector<1x8x512xf32>
    tpu.vector_store %arg8[%c0_15, %c0_16, %c0_17], %18 {strides = array<i32>} : memref<1x8x512xf32, #tpu.memory_space<vmem>>, vector<1x8x512xf32>,
    return
  }
  func.func @transform_0(%arg0: i32, %arg1: i32) -> (i32, i32) {
    %c0_i32 = arith.constant 0 : i32
    %c0_i32_0 = arith.constant 0 : i32
    %c0_i32_1 = arith.constant 0 : i32
    return %c0_i32, %c0_i32_0 : i32, i32
  }
  func.func @transform_1(%arg0: i32, %arg1: i32) -> (i32, i32) {
    %c0_i32 = arith.constant 0 : i32
    %c0_i32_0 = arith.constant 0 : i32
    %c0_i32_1 = arith.constant 0 : i32
    return %c0_i32, %c0_i32_0 : i32, i32
  }
  func.func @transform_2(%arg0: i32, %arg1: i32) -> (i32, i32) {
    %c0_i32 = arith.constant 0 : i32
    %c0_i32_0 = arith.constant 0 : i32
    %c0_i32_1 = arith.constant 0 : i32
    return %c0_i32, %c0_i32_0 : i32, i32
  }
  func.func @transform_3(%arg0: i32, %arg1: i32) -> (i32, i32, i32) {
    %c0_i32 = arith.constant 0 : i32
    %c0_i32_0 = arith.constant 0 : i32
    return %arg0, %arg1, %c0_i32 : i32, i32, i32
  }
  func.func @transform_4(%arg0: i32, %arg1: i32) -> (i32, i32, i32) {
    %c0_i32 = arith.constant 0 : i32
    %c0_i32_0 = arith.constant 0 : i32
    return %arg0, %arg1, %c0_i32 : i32, i32, i32
  }
  func.func @transform_5(%arg0: i32, %arg1: i32) -> (i32, i32, i32) {
    %c0_i32 = arith.constant 0 : i32
    %c0_i32_0 = arith.constant 0 : i32
    return %arg0, %arg1, %c0_i32 : i32, i32, i32
  }
  func.func @transform_6(%arg0: i32, %arg1: i32) -> (i32, i32, i32) {
    %c0_i32 = arith.constant 0 : i32
    %c0_i32_0 = arith.constant 0 : i32
    return %arg0, %arg1, %c0_i32 : i32, i32, i32
  }
}

</mosaic_0001>

<llo_original>
// kernel: tpu_custom_call.1
$region0: #{tpu_custom_call.1}
  #allocation0 [shape = 'u32[]', space=smem, size = 0x4, offset = 0x4, fixed_abs, tag = 'smem constant byte address 0x4 - core index']
  #allocation1 [shape = 'u32[144,128]{1,0:T(1,128)}', space=vmem, size = 0x12000, scoped, tag = 'internal scratch']
  %s0 = inlined_call_operand.hbm [shape: f32[1,512], index: 0, kind: input, shape index: {}]
  %s1 = inlined_call_operand.hbm [shape: f32[16,512], index: 1, kind: input, shape index: {}]
  %s2 = inlined_call_operand.hbm [shape: f32[16,512], index: 2, kind: input, shape index: {}]
  %s3 = inlined_call_operand.hbm [shape: f32[2,8,16], index: 3, kind: input, shape index: {}]
  %s4 = inlined_call_operand.hbm [shape: f32[2,8,16], index: 4, kind: input, shape index: {}]
  %s5 = inlined_call_operand.hbm [shape: f32[2,8,512], index: 5, kind: input, shape index: {}, may-alias: {5,6}]
  %s6 = inlined_call_operand.hbm [shape: f32[2,8,512], index: 6, kind: output, shape index: {}, may-alias: {5,6}]
  %s7 = sld [smem:[#allocation0]]
  $region81: #{tpu_custom_call.1} parent=0
    _
  %s9 = ssub.s32 1, %s7
  %s10 = scalar_select 0, %s9, %s7
  $region1: #{tpu_custom_call.1} parent=0
    #allocation2 [shape = 'u8[2048]{0}', space=vmem, size = 0x800, scoped, tag = 'input window, operand 0, single buffered']
    #allocation3 [shape = 's32[2]{0}', space=sflag, size = 0x8, scoped, tag = 'scoped memory for tpu_custom_call.1']
    #allocation4 [shape = 's32[2]{0}', space=sflag, size = 0x8, scoped, tag = 'scoped memory for tpu_custom_call.1']
    #allocation5 [shape = 'u8[32768]{0}', space=vmem, size = 0x8000, scoped, tag = 'input window, operand 1, single buffered']
    #allocation6 [shape = 's32[1]{0}', space=sflag, size = 0x4, scoped, tag = 'scoped memory for tpu_custom_call.1']
    #allocation7 [shape = 'u8[32768]{0}', space=vmem, size = 0x8000, scoped, tag = 'input window, operand 2, single buffered']
    #allocation8 [shape = 'u8[8192]{0}', space=vmem, size = 0x2000, scoped, tag = 'input window, operand 3']
    #allocation9 [shape = 's32[2]{0}', space=sflag, size = 0x8, scoped, tag = 'scoped memory for tpu_custom_call.1']
    #allocation10 [shape = 'u8[8192]{0}', space=vmem, size = 0x2000, scoped, tag = 'input window, operand 4']
    #allocation11 [shape = 'u8[32768]{0}', space=vmem, size = 0x8000, scoped, tag = 'input window, operand 5']
    #allocation12 [shape = 's32[2]{0}', space=sflag, size = 0x8, scoped, tag = 'scoped memory for tpu_custom_call.1']
    #allocation13 [shape = 'u8[32768]{0}', space=vmem, size = 0x8000, scoped, tag = 'output window, operand 0']
    %11 = vsyncpa [#allocation3], 0
    %12 = vsyncpa [#allocation6], 0
    %13 = vsyncpa [#allocation9], 0
    %s14 = scalar_lea.sflag [#allocation9], 1
    %15 = vsyncpa %s14, 0
    %16 = vsyncpa [#allocation12], 0
    %s17 = scalar_lea.sflag [#allocation12], 1
    %18 = vsyncpa %s17, 0
    %19 = vsyncpa [#allocation4], 0
    %s20 = scalar_lea.sflag [#allocation4], 1
    %21 = vsyncpa %s20, 0
    loop: start=0, step=1, limit=4
    $region2: #{tpu_custom_call.1} parent=1 // loop_pre_header
      _
    $region3: #{tpu_custom_call.1} parent=1 // loop_header
      %s23 = sphi 0, %s27
      %p24 = scmp.ge.s32.totalorder %s23, 4
      %s30 = sphi 0, %s42
      %s31 = sphi 0, %s38
      %s32 = sphi 0, %s30
      %s33 = sphi 0, %s31
      %s34 = sphi 0, %s32
      %s35 = sphi 0, %s33
      %s43 = sphi 0, %s43
      %s45 = sphi 0, %s43
      %s46 = sphi 0, %s45
      %s60 = sphi 0, %s46
      %s64 = sphi 0, %s64
      %s66 = sphi 0, %s64
      %s67 = sphi 0, %s66
      %s81 = sphi 0, %s67
      %s85 = sphi 0, %s85
      %s87 = sphi 0, %s85
      %s88 = sphi 0, %s87
      %s102 = sphi 0, %s88
      %s110 = sphi 0, %s112
      %s113 = sphi 0, %s110
      %s114 = sphi 0, %s113
      %s130 = sphi 0, %s114
      %s138 = sphi 0, %s140
      %s141 = sphi 0, %s138
      %s142 = sphi 0, %s141
      %s158 = sphi 0, %s142
      %s166 = sphi 0, %s168
      %s169 = sphi 0, %s166
      %s170 = sphi 0, %s169
      %s186 = sphi 0, %s170
      %s194 = sphi 0, %s196
      %s197 = sphi 0, %s194
      %s198 = sphi 0, %s197
      %s214 = sphi 0, %s198
    $region4: #{tpu_custom_call.1} parent=1 // loop_header_branch
      %26 = sbr.rel (%p24) target = $region8
    $region5: #{tpu_custom_call.1} parent=1 // loop_body
      %s28 = ssub.s32 %s23, 1
      %s29 = ssub.s32 %s23, 2
      %s36 = sadd.s32 1, %s31
      %p37 = scmp.ge.s32.totalorder %s36, 1
      %s38 = scalar_select %p37, 0, %s36
      %s39 = sadd.s32 1, %s30
      %s40 = scalar_select %p37, %s39, %s30
      %p41 = scmp.ge.s32.totalorder %s40, 2
      %s42 = scalar_select %p41, 0, %s40
      %s44 = sadd.s32 %s43, 1
      %p47 = scmp.eq.s32.totalorder %s23, 1
      %p48 = scmp.ne.s32.totalorder %s43, %s45
      %p49 = scmp.eq.s32.totalorder %s23, 0
      %p50 = por %p48, %p49
      %p51 = scmp.ne.s32.totalorder %s43, %s45
      %p52 = scmp.eq.s32.totalorder %s28, 1
      %p53 = por %p51, %p52
      %p54 = scmp.ne.s32.totalorder %s45, %s46
      %p55 = scmp.eq.s32.totalorder %s28, 0
      %p56 = por %p54, %p55
      %p57 = scmp.ne.s32.totalorder %s45, %s46
      %p58 = scmp.eq.s32.totalorder %s29, 1
      %p59 = por %p57, %p58
      %p61 = scmp.ne.s32.totalorder %s46, %s60
      %p62 = scmp.eq.s32.totalorder %s29, 0
      %p63 = por %p61, %p62
      %s65 = sadd.s32 %s64, 1
      %p68 = scmp.eq.s32.totalorder %s23, 1
      %p69 = scmp.ne.s32.totalorder %s64, %s66
      %p70 = scmp.eq.s32.totalorder %s23, 0
      %p71 = por %p69, %p70
      %p72 = scmp.ne.s32.totalorder %s64, %s66
      %p73 = scmp.eq.s32.totalorder %s28, 1
      %p74 = por %p72, %p73
      %p75 = scmp.ne.s32.totalorder %s66, %s67
      %p76 = scmp.eq.s32.totalorder %s28, 0
      %p77 = por %p75, %p76
      %p78 = scmp.ne.s32.totalorder %s66, %s67
      %p79 = scmp.eq.s32.totalorder %s29, 1
      %p80 = por %p78, %p79
      %p82 = scmp.ne.s32.totalorder %s67, %s81
      %p83 = scmp.eq.s32.totalorder %s29, 0
      %p84 = por %p82, %p83
      %s86 = sadd.s32 %s85, 1
      %p89 = scmp.eq.s32.totalorder %s23, 1
      %p90 = scmp.ne.s32.totalorder %s85, %s87
      %p91 = scmp.eq.s32.totalorder %s23, 0
      %p92 = por %p90, %p91
      %p93 = scmp.ne.s32.totalorder %s85, %s87
      %p94 = scmp.eq.s32.totalorder %s28, 1
      %p95 = por %p93, %p94
      %p96 = scmp.ne.s32.totalorder %s87, %s88
      %p97 = scmp.eq.s32.totalorder %s28, 0
      %p98 = por %p96, %p97
      %p99 = scmp.ne.s32.totalorder %s87, %s88
      %p100 = scmp.eq.s32.totalorder %s29, 1
      %p101 = por %p99, %p100
      %p103 = scmp.ne.s32.totalorder %s88, %s102
      %p104 = scmp.eq.s32.totalorder %s29, 0
      %p105 = por %p103, %p104
      %s106 = ssub.s32 %s30, %s42
      %s107 = ssub.s32 %s31, %s38
      %s108 = sor.u32 %s106, %s107
      %p109 = scmp.eq.s32.totalorder %s108, 0
      %s111 = sadd.s32 %s110, 1
      %s112 = scalar_select %p109, %s110, %s111
      %p115 = pneg %p109
      %p116 = scmp.eq.s32.totalorder %s23, 1
      %p117 = por %p115, %p116
      %p118 = scmp.ne.s32.totalorder %s110, %s113
      %p119 = scmp.eq.s32.totalorder %s23, 0
      %p120 = por %p118, %p119
      %p121 = scmp.ne.s32.totalorder %s110, %s113
      %p122 = scmp.eq.s32.totalorder %s28, 1
      %p123 = por %p121, %p122
      %p124 = scmp.ne.s32.totalorder %s113, %s114
      %p125 = scmp.eq.s32.totalorder %s28, 0
      %p126 = por %p124, %p125
      %p127 = scmp.ne.s32.totalorder %s113, %s114
      %p128 = scmp.eq.s32.totalorder %s29, 1
      %p129 = por %p127, %p128
      %p131 = scmp.ne.s32.totalorder %s114, %s130
      %p132 = scmp.eq.s32.totalorder %s29, 0
      %p133 = por %p131, %p132
      %s134 = ssub.s32 %s30, %s42
      %s135 = ssub.s32 %s31, %s38
      %s136 = sor.u32 %s134, %s135
      %p137 = scmp.eq.s32.totalorder %s136, 0
      %s139 = sadd.s32 %s138, 1
      %s140 = scalar_select %p137, %s138, %s139
      %p143 = pneg %p137
      %p144 = scmp.eq.s32.totalorder %s23, 1
      %p145 = por %p143, %p144
      %p146 = scmp.ne.s32.totalorder %s138, %s141
      %p147 = scmp.eq.s32.totalorder %s23, 0
      %p148 = por %p146, %p147
      %p149 = scmp.ne.s32.totalorder %s138, %s141
      %p150 = scmp.eq.s32.totalorder %s28, 1
      %p151 = por %p149, %p150
      %p152 = scmp.ne.s32.totalorder %s141, %s142
      %p153 = scmp.eq.s32.totalorder %s28, 0
      %p154 = por %p152, %p153
      %p155 = scmp.ne.s32.totalorder %s141, %s142
      %p156 = scmp.eq.s32.totalorder %s29, 1
      %p157 = por %p155, %p156
      %p159 = scmp.ne.s32.totalorder %s142, %s158
      %p160 = scmp.eq.s32.totalorder %s29, 0
      %p161 = por %p159, %p160
      %s162 = ssub.s32 %s30, %s42
      %s163 = ssub.s32 %s31, %s38
      %s164 = sor.u32 %s162, %s163
      %p165 = scmp.eq.s32.totalorder %s164, 0
      %s167 = sadd.s32 %s166, 1
      %s168 = scalar_select %p165, %s166, %s167
      %p171 = pneg %p165
      %p172 = scmp.eq.s32.totalorder %s23, 1
      %p173 = por %p171, %p172
      %p174 = scmp.ne.s32.totalorder %s166, %s169
      %p175 = scmp.eq.s32.totalorder %s23, 0
      %p176 = por %p174, %p175
      %p177 = scmp.ne.s32.totalorder %s166, %s169
      %p178 = scmp.eq.s32.totalorder %s28, 1
      %p179 = por %p177, %p178
      %p180 = scmp.ne.s32.totalorder %s169, %s170
      %p181 = scmp.eq.s32.totalorder %s28, 0
      %p182 = por %p180, %p181
      %p183 = scmp.ne.s32.totalorder %s169, %s170
      %p184 = scmp.eq.s32.totalorder %s29, 1
      %p185 = por %p183, %p184
      %p187 = scmp.ne.s32.totalorder %s170, %s186
      %p188 = scmp.eq.s32.totalorder %s29, 0
      %p189 = por %p187, %p188
      %s190 = ssub.s32 %s30, %s42
      %s191 = ssub.s32 %s31, %s38
      %s192 = sor.u32 %s190, %s191
      %p193 = scmp.eq.s32.totalorder %s192, 0
      %s195 = sadd.s32 %s194, 1
      %s196 = scalar_select %p193, %s194, %s195
      %p199 = pneg %p193
      %p200 = scmp.eq.s32.totalorder %s23, 1
      %p201 = por %p199, %p200
      %p202 = scmp.ne.s32.totalorder %s194, %s197
      %p203 = scmp.eq.s32.totalorder %s23, 0
      %p204 = por %p202, %p203
      %p205 = scmp.ne.s32.totalorder %s194, %s197
      %p206 = scmp.eq.s32.totalorder %s28, 1
      %p207 = por %p205, %p206
      %p208 = scmp.ne.s32.totalorder %s197, %s198
      %p209 = scmp.eq.s32.totalorder %s28, 0
      %p210 = por %p208, %p209
      %p211 = scmp.ne.s32.totalorder %s197, %s198
      %p212 = scmp.eq.s32.totalorder %s29, 1
      %p213 = por %p211, %p212
      %p215 = scmp.ne.s32.totalorder %s198, %s214
      %p216 = scmp.eq.s32.totalorder %s29, 0
      %p217 = por %p215, %p216
      %p218 = scmp.le.s32.totalorder 1, %s23
      %p219 = scmp.lt.s32.totalorder %s23, 3
      %p220 = pnand %p218, %p219
      %p221 = pneg %p220
      // Predicated region
      $region9: #{tpu_custom_call.1} parent=5 // pred_check
        _
      $region10: #{tpu_custom_call.1} parent=5 // pred_check_branch
        %223 = sbr.rel (%p220) target = $region12
      $region11: #{tpu_custom_call.1} parent=5 // pred_region
        %s224 = ssub.s32 %s23, 1
        // Predicated region
        $region13: #{tpu_custom_call.1} parent=11 // pred_check
          %p225 = pneg %p56
        $region14: #{tpu_custom_call.1} parent=11 // pred_check_branch
          %227 = sbr.rel (%p225) target = $region16
        $region15: #{tpu_custom_call.1} parent=11 // pred_region
          %s229 = ssub.s32 64, 64
          %230 = vsyncadd [#allocation3], %s229
          %s232 = sshll.u32 [#allocation2], 4
          %s233 = int_to_ptr.vmem [resolvable:$true] %s232
          %235 = dma.hbm_to_vmem [thread:$0]  %s0, 64, %s233, [#allocation3]
        $region16: #{tpu_custom_call.1} parent=11 // pred_fallthru
          _
        // Predicated region
        $region17: #{tpu_custom_call.1} parent=11 // pred_check
          %p236 = pneg %p77
        $region18: #{tpu_custom_call.1} parent=11 // pred_check_branch
          %238 = sbr.rel (%p236) target = $region20
        $region19: #{tpu_custom_call.1} parent=11 // pred_region
          %s240 = ssub.s32 1024, 1024
          %241 = vsyncadd [#allocation6], %s240
          %s242 = sshll.u32 [#allocation5], 4
          %s243 = int_to_ptr.vmem [resolvable:$true] %s242
          %248 = dma.hbm_to_vmem [thread:$0]  %s1, 1024, %s243, [#allocation6], 512, 512, 32
        $region20: #{tpu_custom_call.1} parent=11 // pred_fallthru
          _
        // Predicated region
        $region21: #{tpu_custom_call.1} parent=11 // pred_check
          %p249 = pneg %p98
        $region22: #{tpu_custom_call.1} parent=11 // pred_check_branch
          %251 = sbr.rel (%p249) target = $region24
        $region23: #{tpu_custom_call.1} parent=11 // pred_region
          %s253 = ssub.s32 1024, 1024
          %254 = vsyncadd [#allocation6], %s253
          %s255 = sshll.u32 [#allocation7], 4
          %s256 = int_to_ptr.vmem [resolvable:$true] %s255
          %261 = dma.hbm_to_vmem [thread:$0]  %s2, 1024, %s256, [#allocation6], 512, 512, 32
        $region24: #{tpu_custom_call.1} parent=11 // pred_fallthru
          _
      $region12: #{tpu_custom_call.1} parent=5 // pred_fallthru
        _
      %p262 = scmp.lt.s32.totalorder %s23, 2
      // Predicated region
      $region25: #{tpu_custom_call.1} parent=5 // pred_check
        %p263 = pneg %p262
      $region26: #{tpu_custom_call.1} parent=5 // pred_check_branch
        %265 = sbr.rel (%p263) target = $region28
      $region27: #{tpu_custom_call.1} parent=5 // pred_region
        // Predicated region
        $region29: #{tpu_custom_call.1} parent=27 // pred_check
          %p266 = pneg %p120
        $region30: #{tpu_custom_call.1} parent=27 // pred_check_branch
          %268 = sbr.rel (%p266) target = $region32
        $region31: #{tpu_custom_call.1} parent=27 // pred_region
          %s269 = sand.u32 %s23, 1
          %s270 = scalar_lea.sflag [#allocation9], %s269
          %s271 = sand.u32 %s110, 1
          %s272 = smul.addr %s271, 8
          %s273 = scalar_lea.vmem [#allocation8], %s272
          %s275 = ssub.s32 128, 128
          %276 = vsyncadd %s270, %s275
          %s277 = sadd.s32 %s31, %s30
          %s278 = smul.addr %s277, 128
          %s279 = scalar_lea.hbm %s3, %s278
          %s281 = sshll.u32 %s273, 4
          %s282 = int_to_ptr.vmem [resolvable:$true] %s281
          %284 = dma.hbm_to_vmem [thread:$0]  %s279, 128, %s282, %s270
        $region32: #{tpu_custom_call.1} parent=27 // pred_fallthru
          _
        // Predicated region
        $region33: #{tpu_custom_call.1} parent=27 // pred_check
          %p285 = pneg %p148
        $region34: #{tpu_custom_call.1} parent=27 // pred_check_branch
          %287 = sbr.rel (%p285) target = $region36
        $region35: #{tpu_custom_call.1} parent=27 // pred_region
          %s288 = sand.u32 %s23, 1
          %s289 = scalar_lea.sflag [#allocation9], %s288
          %s290 = sand.u32 %s138, 1
          %s291 = smul.addr %s290, 8
          %s292 = scalar_lea.vmem [#allocation10], %s291
          %s294 = ssub.s32 128, 128
          %295 = vsyncadd %s289, %s294
          %s296 = sadd.s32 %s31, %s30
          %s297 = smul.addr %s296, 128
          %s298 = scalar_lea.hbm %s4, %s297
          %s300 = sshll.u32 %s292, 4
          %s301 = int_to_ptr.vmem [resolvable:$true] %s300
          %303 = dma.hbm_to_vmem [thread:$0]  %s298, 128, %s301, %s289
        $region36: #{tpu_custom_call.1} parent=27 // pred_fallthru
          _
        // Predicated region
        $region37: #{tpu_custom_call.1} parent=27 // pred_check
          %p304 = pneg %p176
        $region38: #{tpu_custom_call.1} parent=27 // pred_check_branch
          %306 = sbr.rel (%p304) target = $region40
        $region39: #{tpu_custom_call.1} parent=27 // pred_region
          %s307 = sand.u32 %s166, 1
          %s308 = scalar_lea.sflag [#allocation12], %s307
          %s309 = sand.u32 %s166, 1
          %s310 = smul.addr %s309, 32
          %s311 = scalar_lea.vmem [#allocation11], %s310
          %s313 = ssub.s32 512, 512
          %314 = vsyncadd %s308, %s313
          %s315 = smul.addr %s31, 4
          %s316 = smul.addr %s30, 4
          %s317 = sadd.s32 %s315, %s316
          %s318 = smul.addr %s317, 128
          %s319 = scalar_lea.hbm %s5, %s318
          %s321 = sshll.u32 %s311, 4
          %s322 = int_to_ptr.vmem [resolvable:$true] %s321
          %324 = dma.hbm_to_vmem [thread:$0]  %s319, 512, %s322, %s308
        $region40: #{tpu_custom_call.1} parent=27 // pred_fallthru
          _
      $region28: #{tpu_custom_call.1} parent=5 // pred_fallthru
        _
      %p325 = scmp.le.s32.totalorder 1, %s23
      %p326 = scmp.lt.s32.totalorder %s23, 3
      %p327 = pnand %p325, %p326
      %p328 = pneg %p327
      // Predicated region
      $region41: #{tpu_custom_call.1} parent=5 // pred_check
        _
      $region42: #{tpu_custom_call.1} parent=5 // pred_check_branch
        %330 = sbr.rel (%p327) target = $region44
      $region43: #{tpu_custom_call.1} parent=5 // pred_region
        %s331 = ssub.s32 %s23, 1
        // Predicated region
        $region45: #{tpu_custom_call.1} parent=43 // pred_check
          %p332 = pneg %p56
        $region46: #{tpu_custom_call.1} parent=43 // pred_check_branch
          %334 = sbr.rel (%p332) target = $region48
        $region47: #{tpu_custom_call.1} parent=43 // pred_region
          %335 = dma.done [#allocation3], 64
        $region48: #{tpu_custom_call.1} parent=43 // pred_fallthru
          _
        // Predicated region
        $region49: #{tpu_custom_call.1} parent=43 // pred_check
          %p336 = pneg %p77
        $region50: #{tpu_custom_call.1} parent=43 // pred_check_branch
          %338 = sbr.rel (%p336) target = $region52
        $region51: #{tpu_custom_call.1} parent=43 // pred_region
          %339 = dma.done [#allocation6], 1024
        $region52: #{tpu_custom_call.1} parent=43 // pred_fallthru
          _
        // Predicated region
        $region53: #{tpu_custom_call.1} parent=43 // pred_check
          %p340 = pneg %p98
        $region54: #{tpu_custom_call.1} parent=43 // pred_check_branch
          %342 = sbr.rel (%p340) target = $region56
        $region55: #{tpu_custom_call.1} parent=43 // pred_region
          %343 = dma.done [#allocation6], 1024
        $region56: #{tpu_custom_call.1} parent=43 // pred_fallthru
          _
        %s344 = sand.u32 %s28, 1
        %s345 = scalar_lea.sflag [#allocation9], %s344
        %s346 = sand.u32 %s113, 1
        %s347 = smul.addr %s346, 8
        %s348 = scalar_lea.vmem [#allocation8], %s347
        // Predicated region
        $region57: #{tpu_custom_call.1} parent=43 // pred_check
          %p349 = pneg %p126
        $region58: #{tpu_custom_call.1} parent=43 // pred_check_branch
          %351 = sbr.rel (%p349) target = $region60
        $region59: #{tpu_custom_call.1} parent=43 // pred_region
          %352 = dma.done %s345, 128
        $region60: #{tpu_custom_call.1} parent=43 // pred_fallthru
          _
        %s353 = sand.u32 %s28, 1
        %s354 = scalar_lea.sflag [#allocation9], %s353
        %s355 = sand.u32 %s141, 1
        %s356 = smul.addr %s355, 8
        %s357 = scalar_lea.vmem [#allocation10], %s356
        // Predicated region
        $region61: #{tpu_custom_call.1} parent=43 // pred_check
          %p358 = pneg %p154
        $region62: #{tpu_custom_call.1} parent=43 // pred_check_branch
          %360 = sbr.rel (%p358) target = $region64
        $region63: #{tpu_custom_call.1} parent=43 // pred_region
          %361 = dma.done %s354, 128
        $region64: #{tpu_custom_call.1} parent=43 // pred_fallthru
          _
        %s362 = sand.u32 %s169, 1
        %s363 = scalar_lea.sflag [#allocation12], %s362
        %s364 = sand.u32 %s169, 1
        %s365 = smul.addr %s364, 32
        %s366 = scalar_lea.vmem [#allocation11], %s365
        // Predicated region
        $region65: #{tpu_custom_call.1} parent=43 // pred_check
          %p367 = pneg %p182
        $region66: #{tpu_custom_call.1} parent=43 // pred_check_branch
          %369 = sbr.rel (%p367) target = $region68
        $region67: #{tpu_custom_call.1} parent=43 // pred_region
          %370 = dma.done %s363, 512
        $region68: #{tpu_custom_call.1} parent=43 // pred_fallthru
          _
        %p371 = pneg %p56
        %p372 = pneg %p53
        %p373 = pneg %p77
        %p374 = pneg %p74
        %p375 = pneg %p98
        %p376 = pneg %p95
        %s377 = sand.u32 %s28, 1
        %s378 = scalar_lea.sflag [#allocation9], %s377
        %s379 = sand.u32 %s113, 1
        %s380 = smul.addr %s379, 8
        %s381 = scalar_lea.vmem [#allocation8], %s380
        %p382 = pneg %p126
        %p383 = pneg %p123
        %s384 = sand.u32 %s28, 1
        %s385 = scalar_lea.sflag [#allocation9], %s384
        %s386 = sand.u32 %s141, 1
        %s387 = smul.addr %s386, 8
        %s388 = scalar_lea.vmem [#allocation10], %s387
        %p389 = pneg %p154
        %p390 = pneg %p151
        %s391 = sand.u32 %s169, 1
        %s392 = scalar_lea.sflag [#allocation12], %s391
        %s393 = sand.u32 %s169, 1
        %s394 = smul.addr %s393, 32
        %s395 = scalar_lea.vmem [#allocation11], %s394
        %p396 = pneg %p182
        %p397 = pneg %p179
        %p398 = pneg %p210
        %p399 = pneg %p207
        %s400 = sand.u32 %s197, 1
        %s401 = scalar_lea.sflag [#allocation4], %s400
        %s402 = sand.u32 %s197, 1
        %s403 = smul.addr %s402, 32
        %s404 = scalar_lea.vmem [#allocation13], %s403
        %v405 = vld [vmem:[%s348] sm:$0xff]
        %v406 = vld [vmem:[%s357] sm:$0xff]
        %v407 = vld [vmem:[#allocation5] sm:$0xff]
        %v408 = vld [vmem:[#allocation5 + $0x8] sm:$0xff]
        %v409 = vld [vmem:[#allocation5 + $0x10] sm:$0xff]
        %v410 = vld [vmem:[#allocation5 + $0x18] sm:$0xff]
        %v411 = vld [vmem:[#allocation5 + $0x20] sm:$0xff]
        %v412 = vld [vmem:[#allocation5 + $0x28] sm:$0xff]
        %v413 = vld [vmem:[#allocation5 + $0x30] sm:$0xff]
        %v414 = vld [vmem:[#allocation5 + $0x38] sm:$0xff]
        %v415 = vld [vmem:[#allocation7] sm:$0xff]
        %v416 = vld [vmem:[#allocation7 + $0x8] sm:$0xff]
        %v417 = vld [vmem:[#allocation7 + $0x10] sm:$0xff]
        %v418 = vld [vmem:[#allocation7 + $0x18] sm:$0xff]
        %v419 = vld [vmem:[#allocation7 + $0x20] sm:$0xff]
        %v420 = vld [vmem:[#allocation7 + $0x28] sm:$0xff]
        %v421 = vld [vmem:[#allocation7 + $0x30] sm:$0xff]
        %v422 = vld [vmem:[#allocation7 + $0x38] sm:$0xff]
        %vm423 = vcmask 130048
        %v425 = vsel %vm423, %v406, 0
        %427 = vmatprep.subr.mxu0 %v416
        %428 = vmatpush1.msra.mxu0 %v415
        %429 = vmatprep.subr.mxu0 %v420
        %430 = vmatpush1.msra.mxu0 %v419
        %431 = vmatprep.subr.mxu0 0.0
        %432 = vmatpush1.msra.mxu0 0.0
        %433 = vmatprep.subr.mxu0 0.0
        %434 = vmatpush1.msra.mxu0 0.0
        %435 = vmatprep.subr.mxu0 0.0
        %436 = vmatpush1.msra.mxu0 0.0
        %437 = vmatprep.subr.mxu0 0.0
        %438 = vmatpush1.msra.mxu0 0.0
        %439 = vmatprep.subr.mxu0 0.0
        %440 = vmatpush1.msra.mxu0 0.0
        %441 = vmatprep.subr.mxu0 0.0
        %442 = vmatpush1.msra.mxu0 0.0
        %443 = vmatprep.subr.mxu0 0.0
        %444 = vmatpush1.msra.mxu0 0.0
        %445 = vmatprep.subr.mxu0 0.0
        %446 = vmatpush1.msra.mxu0 0.0
        %447 = vmatprep.subr.mxu0 0.0
        %448 = vmatpush1.msra.mxu0 0.0
        %449 = vmatprep.subr.mxu0 0.0
        %450 = vmatpush1.msra.mxu0 0.0
        %451 = vmatprep.subr.mxu0 0.0
        %452 = vmatpush1.msra.mxu0 0.0
        %453 = vmatprep.subr.mxu0 0.0
        %454 = vmatpush1.msra.mxu0 0.0
        %455 = vmatprep.subr.mxu0 0.0
        %456 = vmatpush1.msra.mxu0 0.0
        %457 = vmatprep.subr.mxu0 0.0
        %458 = vmatpush1.msra.mxu0 0.0
        %459 = vmatprep.subr.mxu0 0.0
        %460 = vmatpush1.msra.mxu0 0.0
        %461 = vmatprep.subr.mxu0 0.0
        %462 = vmatpush1.msra.mxu0 0.0
        %463 = vmatprep.subr.mxu0 0.0
        %464 = vmatpush1.msra.mxu0 0.0
        %465 = vmatprep.subr.mxu0 0.0
        %466 = vmatpush1.msra.mxu0 0.0
        %467 = vmatprep.subr.mxu0 0.0
        %468 = vmatpush1.msra.mxu0 0.0
        %469 = vmatprep.subr.mxu0 0.0
        %470 = vmatpush1.msra.mxu0 0.0
        %471 = vmatprep.subr.mxu0 0.0
        %472 = vmatpush1.msra.mxu0 0.0
        %473 = vmatprep.subr.mxu0 0.0
        %474 = vmatpush1.msra.mxu0 0.0
        %475 = vmatprep.subr.mxu0 0.0
        %476 = vmatpush1.msra.mxu0 0.0
        %477 = vmatprep.subr.mxu0 0.0
        %478 = vmatpush1.msra.mxu0 0.0
        %479 = vmatprep.subr.mxu0 0.0
        %480 = vmatpush1.msra.mxu0 0.0
        %481 = vmatprep.subr.mxu0 0.0
        %482 = vmatpush1.msra.mxu0 0.0
        %483 = vmatprep.subr.mxu0 0.0
        %484 = vmatpush1.msra.mxu0 0.0
        %485 = vmatprep.subr.mxu0 0.0
        %486 = vmatpush1.msra.mxu0 0.0
        %487 = vmatprep.subr.mxu0 0.0
        %488 = vmatpush1.msra.mxu0 0.0
        %489 = vmatprep.subr.mxu0 0.0
        %490 = vmatpush1.msra.mxu0 0.0
        %491 = vmatprep.mubr.f32.mxu0 0.0
        %492 = vmatmul.mubr.f32.gmra.mrb[0].mxu0 %v425
        %v493 = vpop.f32.mrb[0].mxu0
        %v494 = vadd.f32 0.0, %v493
        %v495 = vpop.f32.mrb[0].mxu0
        %v496 = vadd.f32 0.0, %v495
        %497 = vdwg.mxu0
        %498 = vmatprep.subr.mxu0 %v418
        %499 = vmatpush1.msra.mxu0 %v417
        %500 = vmatprep.subr.mxu0 %v422
        %501 = vmatpush1.msra.mxu0 %v421
        %502 = vmatprep.subr.mxu0 0.0
        %503 = vmatpush1.msra.mxu0 0.0
        %504 = vmatprep.subr.mxu0 0.0
        %505 = vmatpush1.msra.mxu0 0.0
        %506 = vmatprep.subr.mxu0 0.0
        %507 = vmatpush1.msra.mxu0 0.0
        %508 = vmatprep.subr.mxu0 0.0
        %509 = vmatpush1.msra.mxu0 0.0
        %510 = vmatprep.subr.mxu0 0.0
        %511 = vmatpush1.msra.mxu0 0.0
        %512 = vmatprep.subr.mxu0 0.0
        %513 = vmatpush1.msra.mxu0 0.0
        %514 = vmatprep.subr.mxu0 0.0
        %515 = vmatpush1.msra.mxu0 0.0
        %516 = vmatprep.subr.mxu0 0.0
        %517 = vmatpush1.msra.mxu0 0.0
        %518 = vmatprep.subr.mxu0 0.0
        %519 = vmatpush1.msra.mxu0 0.0
        %520 = vmatprep.subr.mxu0 0.0
        %521 = vmatpush1.msra.mxu0 0.0
        %522 = vmatprep.subr.mxu0 0.0
        %523 = vmatpush1.msra.mxu0 0.0
        %524 = vmatprep.subr.mxu0 0.0
        %525 = vmatpush1.msra.mxu0 0.0
        %526 = vmatprep.subr.mxu0 0.0
        %527 = vmatpush1.msra.mxu0 0.0
        %528 = vmatprep.subr.mxu0 0.0
        %529 = vmatpush1.msra.mxu0 0.0
        %530 = vmatprep.subr.mxu0 0.0
        %531 = vmatpush1.msra.mxu0 0.0
        %532 = vmatprep.subr.mxu0 0.0
        %533 = vmatpush1.msra.mxu0 0.0
        %534 = vmatprep.subr.mxu0 0.0
        %535 = vmatpush1.msra.mxu0 0.0
        %536 = vmatprep.subr.mxu0 0.0
        %537 = vmatpush1.msra.mxu0 0.0
        %538 = vmatprep.subr.mxu0 0.0
        %539 = vmatpush1.msra.mxu0 0.0
        %540 = vmatprep.subr.mxu0 0.0
        %541 = vmatpush1.msra.mxu0 0.0
        %542 = vmatprep.subr.mxu0 0.0
        %543 = vmatpush1.msra.mxu0 0.0
        %544 = vmatprep.subr.mxu0 0.0
        %545 = vmatpush1.msra.mxu0 0.0
        %546 = vmatprep.subr.mxu0 0.0
        %547 = vmatpush1.msra.mxu0 0.0
        %548 = vmatprep.subr.mxu0 0.0
        %549 = vmatpush1.msra.mxu0 0.0
        %550 = vmatprep.subr.mxu0 0.0
        %551 = vmatpush1.msra.mxu0 0.0
        %552 = vmatprep.subr.mxu0 0.0
        %553 = vmatpush1.msra.mxu0 0.0
        %554 = vmatprep.subr.mxu0 0.0
        %555 = vmatpush1.msra.mxu0 0.0
        %556 = vmatprep.subr.mxu0 0.0
        %557 = vmatpush1.msra.mxu0 0.0
        %558 = vmatprep.subr.mxu0 0.0
        %559 = vmatpush1.msra.mxu0 0.0
        %560 = vmatprep.subr.mxu0 0.0
        %561 = vmatpush1.msra.mxu0 0.0
        %562 = vmatprep.mubr.f32.mxu0 0.0
        %563 = vmatmul.mubr.f32.gmra.mrb[0].mxu0 %v425
        %v564 = vpop.f32.mrb[0].mxu0
        %v565 = vadd.f32 0.0, %v564
        %v566 = vpop.f32.mrb[0].mxu0
        %v567 = vadd.f32 0.0, %v566
        %568 = vdwg.mxu0
        %v570 = vsel %vm423, %v405, 0
        %572 = vmatprep.subr.mxu0 %v408
        %573 = vmatpush1.msra.mxu0 %v407
        %574 = vmatprep.subr.mxu0 %v412
        %575 = vmatpush1.msra.mxu0 %v411
        %576 = vmatprep.subr.mxu0 0.0
        %577 = vmatpush1.msra.mxu0 0.0
        %578 = vmatprep.subr.mxu0 0.0
        %579 = vmatpush1.msra.mxu0 0.0
        %580 = vmatprep.subr.mxu0 0.0
        %581 = vmatpush1.msra.mxu0 0.0
        %582 = vmatprep.subr.mxu0 0.0
        %583 = vmatpush1.msra.mxu0 0.0
        %584 = vmatprep.subr.mxu0 0.0
        %585 = vmatpush1.msra.mxu0 0.0
        %586 = vmatprep.subr.mxu0 0.0
        %587 = vmatpush1.msra.mxu0 0.0
        %588 = vmatprep.subr.mxu0 0.0
        %589 = vmatpush1.msra.mxu0 0.0
        %590 = vmatprep.subr.mxu0 0.0
        %591 = vmatpush1.msra.mxu0 0.0
        %592 = vmatprep.subr.mxu0 0.0
        %593 = vmatpush1.msra.mxu0 0.0
        %594 = vmatprep.subr.mxu0 0.0
        %595 = vmatpush1.msra.mxu0 0.0
        %596 = vmatprep.subr.mxu0 0.0
        %597 = vmatpush1.msra.mxu0 0.0
        %598 = vmatprep.subr.mxu0 0.0
        %599 = vmatpush1.msra.mxu0 0.0
        %600 = vmatprep.subr.mxu0 0.0
        %601 = vmatpush1.msra.mxu0 0.0
        %602 = vmatprep.subr.mxu0 0.0
        %603 = vmatpush1.msra.mxu0 0.0
        %604 = vmatprep.subr.mxu0 0.0
        %605 = vmatpush1.msra.mxu0 0.0
        %606 = vmatprep.subr.mxu0 0.0
        %607 = vmatpush1.msra.mxu0 0.0
        %608 = vmatprep.subr.mxu0 0.0
        %609 = vmatpush1.msra.mxu0 0.0
        %610 = vmatprep.subr.mxu0 0.0
        %611 = vmatpush1.msra.mxu0 0.0
        %612 = vmatprep.subr.mxu0 0.0
        %613 = vmatpush1.msra.mxu0 0.0
        %614 = vmatprep.subr.mxu0 0.0
        %615 = vmatpush1.msra.mxu0 0.0
        %616 = vmatprep.subr.mxu0 0.0
        %617 = vmatpush1.msra.mxu0 0.0
        %618 = vmatprep.subr.mxu0 0.0
        %619 = vmatpush1.msra.mxu0 0.0
        %620 = vmatprep.subr.mxu0 0.0
        %621 = vmatpush1.msra.mxu0 0.0
        %622 = vmatprep.subr.mxu0 0.0
        %623 = vmatpush1.msra.mxu0 0.0
        %624 = vmatprep.subr.mxu0 0.0
        %625 = vmatpush1.msra.mxu0 0.0
        %626 = vmatprep.subr.mxu0 0.0
        %627 = vmatpush1.msra.mxu0 0.0
        %628 = vmatprep.subr.mxu0 0.0
        %629 = vmatpush1.msra.mxu0 0.0
        %630 = vmatprep.subr.mxu0 0.0
        %631 = vmatpush1.msra.mxu0 0.0
        %632 = vmatprep.subr.mxu0 0.0
        %633 = vmatpush1.msra.mxu0 0.0
        %634 = vmatprep.subr.mxu0 0.0
        %635 = vmatpush1.msra.mxu0 0.0
        %636 = vmatprep.mubr.f32.mxu0 0.0
        %637 = vmatmul.mubr.f32.gmra.mrb[0].mxu0 %v570
        %v638 = vpop.f32.mrb[0].mxu0
        %v639 = vadd.f32 %v494, %v638
        %v640 = vpop.f32.mrb[0].mxu0
        %v641 = vadd.f32 %v496, %v640
        %642 = vdwg.mxu0
        %643 = vmatprep.subr.mxu0 %v410
        %644 = vmatpush1.msra.mxu0 %v409
        %645 = vmatprep.subr.mxu0 %v414
        %646 = vmatpush1.msra.mxu0 %v413
        %647 = vmatprep.subr.mxu0 0.0
        %648 = vmatpush1.msra.mxu0 0.0
        %649 = vmatprep.subr.mxu0 0.0
        %650 = vmatpush1.msra.mxu0 0.0
        %651 = vmatprep.subr.mxu0 0.0
        %652 = vmatpush1.msra.mxu0 0.0
        %653 = vmatprep.subr.mxu0 0.0
        %654 = vmatpush1.msra.mxu0 0.0
        %655 = vmatprep.subr.mxu0 0.0
        %656 = vmatpush1.msra.mxu0 0.0
        %657 = vmatprep.subr.mxu0 0.0
        %658 = vmatpush1.msra.mxu0 0.0
        %659 = vmatprep.subr.mxu0 0.0
        %660 = vmatpush1.msra.mxu0 0.0
        %661 = vmatprep.subr.mxu0 0.0
        %662 = vmatpush1.msra.mxu0 0.0
        %663 = vmatprep.subr.mxu0 0.0
        %664 = vmatpush1.msra.mxu0 0.0
        %665 = vmatprep.subr.mxu0 0.0
        %666 = vmatpush1.msra.mxu0 0.0
        %667 = vmatprep.subr.mxu0 0.0
        %668 = vmatpush1.msra.mxu0 0.0
        %669 = vmatprep.subr.mxu0 0.0
        %670 = vmatpush1.msra.mxu0 0.0
        %671 = vmatprep.subr.mxu0 0.0
        %672 = vmatpush1.msra.mxu0 0.0
        %673 = vmatprep.subr.mxu0 0.0
        %674 = vmatpush1.msra.mxu0 0.0
        %675 = vmatprep.subr.mxu0 0.0
        %676 = vmatpush1.msra.mxu0 0.0
        %677 = vmatprep.subr.mxu0 0.0
        %678 = vmatpush1.msra.mxu0 0.0
        %679 = vmatprep.subr.mxu0 0.0
        %680 = vmatpush1.msra.mxu0 0.0
        %681 = vmatprep.subr.mxu0 0.0
        %682 = vmatpush1.msra.mxu0 0.0
        %683 = vmatprep.subr.mxu0 0.0
        %684 = vmatpush1.msra.mxu0 0.0
        %685 = vmatprep.subr.mxu0 0.0
        %686 = vmatpush1.msra.mxu0 0.0
        %687 = vmatprep.subr.mxu0 0.0
        %688 = vmatpush1.msra.mxu0 0.0
        %689 = vmatprep.subr.mxu0 0.0
        %690 = vmatpush1.msra.mxu0 0.0
        %691 = vmatprep.subr.mxu0 0.0
        %692 = vmatpush1.msra.mxu0 0.0
        %693 = vmatprep.subr.mxu0 0.0
        %694 = vmatpush1.msra.mxu0 0.0
        %695 = vmatprep.subr.mxu0 0.0
        %696 = vmatpush1.msra.mxu0 0.0
        %697 = vmatprep.subr.mxu0 0.0
        %698 = vmatpush1.msra.mxu0 0.0
        %699 = vmatprep.subr.mxu0 0.0
        %700 = vmatpush1.msra.mxu0 0.0
        %701 = vmatprep.subr.mxu0 0.0
        %702 = vmatpush1.msra.mxu0 0.0
        %703 = vmatprep.subr.mxu0 0.0
        %704 = vmatpush1.msra.mxu0 0.0
        %705 = vmatprep.subr.mxu0 0.0
        %706 = vmatpush1.msra.mxu0 0.0
        %707 = vmatprep.mubr.f32.mxu0 0.0
        %708 = vmatmul.mubr.f32.gmra.mrb[0].mxu0 %v570
        %v709 = vpop.f32.mrb[0].mxu0
        %v710 = vadd.f32 %v565, %v709
        %v711 = vpop.f32.mrb[0].mxu0
        %v712 = vadd.f32 %v567, %v711
        %713 = vdwg.mxu0
        %v714 = vld [vmem:[#allocation2] sm:$0xf]
        %v716 = vlaneseq
        %v717 = vshrl.u32 %v716, 7
        %v718 = vsub.s32 0, %v717
        %v719 = vrot.slane %v714, %v718
        %v720 = vlaneseq
        %v721 = vshrl.u32 %v720, 7
        %v722 = vsub.s32 1, %v721
        %v723 = vrot.slane %v714, %v722
        %v724 = vlaneseq
        %v725 = vshrl.u32 %v724, 7
        %v726 = vsub.s32 2, %v725
        %v727 = vrot.slane %v714, %v726
        %v728 = vlaneseq
        %v729 = vshrl.u32 %v728, 7
        %v730 = vsub.s32 3, %v729
        %v731 = vrot.slane %v714, %v730
        %v736 = vadd.f32 %v639, %v719
        %v737 = vadd.f32 %v641, %v723
        %v738 = vadd.f32 %v710, %v727
        %v739 = vadd.f32 %v712, %v731
        %v740 = vld [vmem:[%s366] sm:$0xff]
        %v741 = vld [vmem:[%s366 + $0x8] sm:$0xff]
        %v742 = vld [vmem:[%s366 + $0x10] sm:$0xff]
        %v743 = vld [vmem:[%s366 + $0x18] sm:$0xff]
        %v744 = vand.u32 2147483647, %v736
        %vm745 = vcmp.le.f32.partialorder %v744, 0.7853982
        %vm746 = vcmp.lt.s32.totalorder %v736, 0
        %v747 = vand.u32 %v736, 2139095040
        %v748 = vshrl.u32 %v747, 23
        %v749 = vsub.s32 %v748, 127
        %v750 = vand.u32 2147483647, %v736
        %v751 = vand.u32 %v750, 8388607
        %v752 = vor.u32 %v751, 8388608
        %v753 = vsub.s32 0, %v752
        %v754 = vadd.s32 %v749, 1
        %vm755 = vcmp.gt.s32.totalorder %v754, 0
        %v756 = vsel %vm755, %v754, 0
        %v757 = vshrl.u32 %v756, 5
        %v758 = vand.u32 %v756, 31
        %v759 = vsub.s32 32, %v758
        %v760 = vshrl.u32 683565275, %v759
        %v761 = vshll.u32 683565275, %v758
        %v762 = vshrl.u32 2475754826, %v759
        %v763 = vor.u32 %v761, %v762
        %v764 = vshll.u32 2475754826, %v758
        %v765 = vshrl.u32 2131351028, %v759
        %v766 = vor.u32 %v764, %v765
        %v767 = vshll.u32 2131351028, %v758
        %v768 = vshrl.u32 2102212464, %v759
        %v769 = vor.u32 %v767, %v768
        %v770 = vshll.u32 2102212464, %v758
        %v771 = vshrl.u32 920167782, %v759
        %v772 = vor.u32 %v770, %v771
        %v773 = vshll.u32 920167782, %v758
        %v774 = vshrl.u32 1326507024, %v759
        %v775 = vor.u32 %v773, %v774
        %vm776 = vcmp.lt.s32.totalorder %v757, 1
        %vm777 = vcmp.lt.s32.totalorder %v757, 2
        %vm778 = vcmp.lt.s32.totalorder %v757, 3
        %vm779 = vcmp.lt.s32.totalorder %v757, 4
        %v780 = vsel %vm776, %v760, %v763
        %v781 = vsel %vm779, %v769, 2102212464
        %v782 = vsel %vm778, %v766, %v781
        %v783 = vsel %vm777, %v780, %v782
        %v784 = vsel %vm776, %v763, %v766
        %v785 = vsel %vm779, %v772, 920167782
        %v786 = vsel %vm778, %v769, %v785
        %v787 = vsel %vm777, %v784, %v786
        %v788 = vsel %vm776, %v766, %v769
        %v789 = vsel %vm779, %v775, 1326507024
        %v790 = vsel %vm778, %v772, %v789
        %v791 = vsel %vm777, %v788, %v790
        %v792 = vshll.u32 %v752, 8
        %v793 = vmul.u32.u64.compose %v792, %v791
        %v794 = vextract.low.u32 %v793
        %v795 = vextract.high.u32 %v793
        %v796 = vmul.u32.u64.compose %v792, %v787
        %v797 = vextract.low.u32 %v796
        %v798 = vextract.high.u32 %v796
        %v799 = vmul.u32 %v792, %v783
        %v800 = vadd.s32 %v795, %v797
        %vm801 = vc.u32 %v795, %v797
        %v802 = vadd.s32 %v798, 1
        %v803 = vsel %vm801, %v802, %v798
        %v804 = vadd.s32 %v799, %v803
        %v805 = vadd.s32 %v804, 536870912
        %v806 = vshrl.u32 %v805, 30
        %v807 = vshll.u32 %v806, 30
        %v808 = vsub.s32 %v804, %v807
        %vm809 = vcmp.lt.s32.totalorder %v808, 0
        %v810 = vsub.s32 0, %v808
        %v811 = vsel %vm809, %v810, %v808
        %v812 = vclz %v811
        %v813 = vsub.s32 %v812, 2
        %vm814 = vcmp.gt.s32.totalorder 0, %v813
        %v815 = vsel %vm814, 0, %v813
        %v816 = vsub.s32 32, %v815
        %v817 = vshll.u32 %v808, %v815
        %v818 = vshrl.u32 %v800, %v816
        %v819 = vor.u32 %v817, %v818
        %v820 = vsub.s32 4294967266, %v815
        %v821 = vadd.s32 %v820, 127
        %v822 = vshll.u32 %v821, 23
        %v823 = vor.u32 4788187, %v822
        %v824 = vand.u32 2147483647, %v823
        %v826 = vcvt.s32.f32 %v819
        %v827 = vmul.f32 %v826, %v824
        %v828 = vxor.u32 %v827, 2147483648
        %v829 = vsel %vm746, %v828, %v827
        %v830 = vsub.s32 4, %v806
        %v831 = vsel %vm746, %v830, %v806
        %v832 = vsel %vm745, %v736, %v829
        %v833 = vsel %vm745, 0, %v831
        %v834 = vcosq.f32.pop %v832
        %v835 = vsinq.f32.pop %v832
        %vm836 = vweird.f32 %v736
        %v837 = vadd.s32 %v833, 3
        %v838 = vand.u32 %v837, 3
        %vm839 = vcmp.lt.s32.totalorder %v838, 2
        %vm840 = vcmp.eq.s32.totalorder %v838, 0
        %v841 = vxor.u32 %v835, 2147483648
        %v842 = vsel %vm840, %v834, %v841
        %vm843 = vcmp.eq.s32.totalorder %v838, 2
        %v844 = vxor.u32 %v834, 2147483648
        %v845 = vsel %vm843, %v844, %v835
        %v846 = vsel %vm839, %v842, %v845
        %v847 = vsel %vm836, nan, %v846
        %v848 = vand.u32 2147483647, %v737
        %vm849 = vcmp.le.f32.partialorder %v848, 0.7853982
        %vm850 = vcmp.lt.s32.totalorder %v737, 0
        %v851 = vand.u32 %v737, 2139095040
        %v852 = vshrl.u32 %v851, 23
        %v853 = vsub.s32 %v852, 127
        %v854 = vand.u32 2147483647, %v737
        %v855 = vand.u32 %v854, 8388607
        %v856 = vor.u32 %v855, 8388608
        %v857 = vsub.s32 0, %v856
        %v858 = vadd.s32 %v853, 1
        %vm859 = vcmp.gt.s32.totalorder %v858, 0
        %v860 = vsel %vm859, %v858, 0
        %v861 = vshrl.u32 %v860, 5
        %v862 = vand.u32 %v860, 31
        %v863 = vsub.s32 32, %v862
        %v864 = vshrl.u32 683565275, %v863
        %v865 = vshll.u32 683565275, %v862
        %v866 = vshrl.u32 2475754826, %v863
        %v867 = vor.u32 %v865, %v866
        %v868 = vshll.u32 2475754826, %v862
        %v869 = vshrl.u32 2131351028, %v863
        %v870 = vor.u32 %v868, %v869
        %v871 = vshll.u32 2131351028, %v862
        %v872 = vshrl.u32 2102212464, %v863
        %v873 = vor.u32 %v871, %v872
        %v874 = vshll.u32 2102212464, %v862
        %v875 = vshrl.u32 920167782, %v863
        %v876 = vor.u32 %v874, %v875
        %v877 = vshll.u32 920167782, %v862
        %v878 = vshrl.u32 1326507024, %v863
        %v879 = vor.u32 %v877, %v878
        %vm880 = vcmp.lt.s32.totalorder %v861, 1
        %vm881 = vcmp.lt.s32.totalorder %v861, 2
        %vm882 = vcmp.lt.s32.totalorder %v861, 3
        %vm883 = vcmp.lt.s32.totalorder %v861, 4
        %v884 = vsel %vm880, %v864, %v867
        %v885 = vsel %vm883, %v873, 2102212464
        %v886 = vsel %vm882, %v870, %v885
        %v887 = vsel %vm881, %v884, %v886
        %v888 = vsel %vm880, %v867, %v870
        %v889 = vsel %vm883, %v876, 920167782
        %v890 = vsel %vm882, %v873, %v889
        %v891 = vsel %vm881, %v888, %v890
        %v892 = vsel %vm880, %v870, %v873
        %v893 = vsel %vm883, %v879, 1326507024
        %v894 = vsel %vm882, %v876, %v893
        %v895 = vsel %vm881, %v892, %v894
        %v896 = vshll.u32 %v856, 8
        %v897 = vmul.u32.u64.compose %v896, %v895
        %v898 = vextract.low.u32 %v897
        %v899 = vextract.high.u32 %v897
        %v900 = vmul.u32.u64.compose %v896, %v891
        %v901 = vextract.low.u32 %v900
        %v902 = vextract.high.u32 %v900
        %v903 = vmul.u32 %v896, %v887
        %v904 = vadd.s32 %v899, %v901
        %vm905 = vc.u32 %v899, %v901
        %v906 = vadd.s32 %v902, 1
        %v907 = vsel %vm905, %v906, %v902
        %v908 = vadd.s32 %v903, %v907
        %v909 = vadd.s32 %v908, 536870912
        %v910 = vshrl.u32 %v909, 30
        %v911 = vshll.u32 %v910, 30
        %v912 = vsub.s32 %v908, %v911
        %vm913 = vcmp.lt.s32.totalorder %v912, 0
        %v914 = vsub.s32 0, %v912
        %v915 = vsel %vm913, %v914, %v912
        %v916 = vclz %v915
        %v917 = vsub.s32 %v916, 2
        %vm918 = vcmp.gt.s32.totalorder 0, %v917
        %v919 = vsel %vm918, 0, %v917
        %v920 = vsub.s32 32, %v919
        %v921 = vshll.u32 %v912, %v919
        %v922 = vshrl.u32 %v904, %v920
        %v923 = vor.u32 %v921, %v922
        %v924 = vsub.s32 4294967266, %v919
        %v925 = vadd.s32 %v924, 127
        %v926 = vshll.u32 %v925, 23
        %v927 = vor.u32 4788187, %v926
        %v928 = vand.u32 2147483647, %v927
        %v930 = vcvt.s32.f32 %v923
        %v931 = vmul.f32 %v930, %v928
        %v932 = vxor.u32 %v931, 2147483648
        %v933 = vsel %vm850, %v932, %v931
        %v934 = vsub.s32 4, %v910
        %v935 = vsel %vm850, %v934, %v910
        %v936 = vsel %vm849, %v737, %v933
        %v937 = vsel %vm849, 0, %v935
        %v938 = vcosq.f32.pop %v936
        %v939 = vsinq.f32.pop %v936
        %vm940 = vweird.f32 %v737
        %v941 = vadd.s32 %v937, 3
        %v942 = vand.u32 %v941, 3
        %vm943 = vcmp.lt.s32.totalorder %v942, 2
        %vm944 = vcmp.eq.s32.totalorder %v942, 0
        %v945 = vxor.u32 %v939, 2147483648
        %v946 = vsel %vm944, %v938, %v945
        %vm947 = vcmp.eq.s32.totalorder %v942, 2
        %v948 = vxor.u32 %v938, 2147483648
        %v949 = vsel %vm947, %v948, %v939
        %v950 = vsel %vm943, %v946, %v949
        %v951 = vsel %vm940, nan, %v950
        %v952 = vand.u32 2147483647, %v738
        %vm953 = vcmp.le.f32.partialorder %v952, 0.7853982
        %vm954 = vcmp.lt.s32.totalorder %v738, 0
        %v955 = vand.u32 %v738, 2139095040
        %v956 = vshrl.u32 %v955, 23
        %v957 = vsub.s32 %v956, 127
        %v958 = vand.u32 2147483647, %v738
        %v959 = vand.u32 %v958, 8388607
        %v960 = vor.u32 %v959, 8388608
        %v961 = vsub.s32 0, %v960
        %v962 = vadd.s32 %v957, 1
        %vm963 = vcmp.gt.s32.totalorder %v962, 0
        %v964 = vsel %vm963, %v962, 0
        %v965 = vshrl.u32 %v964, 5
        %v966 = vand.u32 %v964, 31
        %v967 = vsub.s32 32, %v966
        %v968 = vshrl.u32 683565275, %v967
        %v969 = vshll.u32 683565275, %v966
        %v970 = vshrl.u32 2475754826, %v967
        %v971 = vor.u32 %v969, %v970
        %v972 = vshll.u32 2475754826, %v966
        %v973 = vshrl.u32 2131351028, %v967
        %v974 = vor.u32 %v972, %v973
        %v975 = vshll.u32 2131351028, %v966
        %v976 = vshrl.u32 2102212464, %v967
        %v977 = vor.u32 %v975, %v976
        %v978 = vshll.u32 2102212464, %v966
        %v979 = vshrl.u32 920167782, %v967
        %v980 = vor.u32 %v978, %v979
        %v981 = vshll.u32 920167782, %v966
        %v982 = vshrl.u32 1326507024, %v967
        %v983 = vor.u32 %v981, %v982
        %vm984 = vcmp.lt.s32.totalorder %v965, 1
        %vm985 = vcmp.lt.s32.totalorder %v965, 2
        %vm986 = vcmp.lt.s32.totalorder %v965, 3
        %vm987 = vcmp.lt.s32.totalorder %v965, 4
        %v988 = vsel %vm984, %v968, %v971
        %v989 = vsel %vm987, %v977, 2102212464
        %v990 = vsel %vm986, %v974, %v989
        %v991 = vsel %vm985, %v988, %v990
        %v992 = vsel %vm984, %v971, %v974
        %v993 = vsel %vm987, %v980, 920167782
        %v994 = vsel %vm986, %v977, %v993
        %v995 = vsel %vm985, %v992, %v994
        %v996 = vsel %vm984, %v974, %v977
        %v997 = vsel %vm987, %v983, 1326507024
        %v998 = vsel %vm986, %v980, %v997
        %v999 = vsel %vm985, %v996, %v998
        %v1000 = vshll.u32 %v960, 8
        %v1001 = vmul.u32.u64.compose %v1000, %v999
        %v1002 = vextract.low.u32 %v1001
        %v1003 = vextract.high.u32 %v1001
        %v1004 = vmul.u32.u64.compose %v1000, %v995
        %v1005 = vextract.low.u32 %v1004
        %v1006 = vextract.high.u32 %v1004
        %v1007 = vmul.u32 %v1000, %v991
        %v1008 = vadd.s32 %v1003, %v1005
        %vm1009 = vc.u32 %v1003, %v1005
        %v1010 = vadd.s32 %v1006, 1
        %v1011 = vsel %vm1009, %v1010, %v1006
        %v1012 = vadd.s32 %v1007, %v1011
        %v1013 = vadd.s32 %v1012, 536870912
        %v1014 = vshrl.u32 %v1013, 30
        %v1015 = vshll.u32 %v1014, 30
        %v1016 = vsub.s32 %v1012, %v1015
        %vm1017 = vcmp.lt.s32.totalorder %v1016, 0
        %v1018 = vsub.s32 0, %v1016
        %v1019 = vsel %vm1017, %v1018, %v1016
        %v1020 = vclz %v1019
        %v1021 = vsub.s32 %v1020, 2
        %vm1022 = vcmp.gt.s32.totalorder 0, %v1021
        %v1023 = vsel %vm1022, 0, %v1021
        %v1024 = vsub.s32 32, %v1023
        %v1025 = vshll.u32 %v1016, %v1023
        %v1026 = vshrl.u32 %v1008, %v1024
        %v1027 = vor.u32 %v1025, %v1026
        %v1028 = vsub.s32 4294967266, %v1023
        %v1029 = vadd.s32 %v1028, 127
        %v1030 = vshll.u32 %v1029, 23
        %v1031 = vor.u32 4788187, %v1030
        %v1032 = vand.u32 2147483647, %v1031
        %v1034 = vcvt.s32.f32 %v1027
        %v1035 = vmul.f32 %v1034, %v1032
        %v1036 = vxor.u32 %v1035, 2147483648
        %v1037 = vsel %vm954, %v1036, %v1035
        %v1038 = vsub.s32 4, %v1014
        %v1039 = vsel %vm954, %v1038, %v1014
        %v1040 = vsel %vm953, %v738, %v1037
        %v1041 = vsel %vm953, 0, %v1039
        %v1042 = vcosq.f32.pop %v1040
        %v1043 = vsinq.f32.pop %v1040
        %vm1044 = vweird.f32 %v738
        %v1045 = vadd.s32 %v1041, 3
        %v1046 = vand.u32 %v1045, 3
        %vm1047 = vcmp.lt.s32.totalorder %v1046, 2
        %vm1048 = vcmp.eq.s32.totalorder %v1046, 0
        %v1049 = vxor.u32 %v1043, 2147483648
        %v1050 = vsel %vm1048, %v1042, %v1049
        %vm1051 = vcmp.eq.s32.totalorder %v1046, 2
        %v1052 = vxor.u32 %v1042, 2147483648
        %v1053 = vsel %vm1051, %v1052, %v1043
        %v1054 = vsel %vm1047, %v1050, %v1053
        %v1055 = vsel %vm1044, nan, %v1054
        %v1056 = vand.u32 2147483647, %v739
        %vm1057 = vcmp.le.f32.partialorder %v1056, 0.7853982
        %vm1058 = vcmp.lt.s32.totalorder %v739, 0
        %v1059 = vand.u32 %v739, 2139095040
        %v1060 = vshrl.u32 %v1059, 23
        %v1061 = vsub.s32 %v1060, 127
        %v1062 = vand.u32 2147483647, %v739
        %v1063 = vand.u32 %v1062, 8388607
        %v1064 = vor.u32 %v1063, 8388608
        %v1065 = vsub.s32 0, %v1064
        %v1066 = vadd.s32 %v1061, 1
        %vm1067 = vcmp.gt.s32.totalorder %v1066, 0
        %v1068 = vsel %vm1067, %v1066, 0
        %v1069 = vshrl.u32 %v1068, 5
        %v1070 = vand.u32 %v1068, 31
        %v1071 = vsub.s32 32, %v1070
        %v1072 = vshrl.u32 683565275, %v1071
        %v1073 = vshll.u32 683565275, %v1070
        %v1074 = vshrl.u32 2475754826, %v1071
        %v1075 = vor.u32 %v1073, %v1074
        %v1076 = vshll.u32 2475754826, %v1070
        %v1077 = vshrl.u32 2131351028, %v1071
        %v1078 = vor.u32 %v1076, %v1077
        %v1079 = vshll.u32 2131351028, %v1070
        %v1080 = vshrl.u32 2102212464, %v1071
        %v1081 = vor.u32 %v1079, %v1080
        %v1082 = vshll.u32 2102212464, %v1070
        %v1083 = vshrl.u32 920167782, %v1071
        %v1084 = vor.u32 %v1082, %v1083
        %v1085 = vshll.u32 920167782, %v1070
        %v1086 = vshrl.u32 1326507024, %v1071
        %v1087 = vor.u32 %v1085, %v1086
        %vm1088 = vcmp.lt.s32.totalorder %v1069, 1
        %vm1089 = vcmp.lt.s32.totalorder %v1069, 2
        %vm1090 = vcmp.lt.s32.totalorder %v1069, 3
        %vm1091 = vcmp.lt.s32.totalorder %v1069, 4
        %v1092 = vsel %vm1088, %v1072, %v1075
        %v1093 = vsel %vm1091, %v1081, 2102212464
        %v1094 = vsel %vm1090, %v1078, %v1093
        %v1095 = vsel %vm1089, %v1092, %v1094
        %v1096 = vsel %vm1088, %v1075, %v1078
        %v1097 = vsel %vm1091, %v1084, 920167782
        %v1098 = vsel %vm1090, %v1081, %v1097
        %v1099 = vsel %vm1089, %v1096, %v1098
        %v1100 = vsel %vm1088, %v1078, %v1081
        %v1101 = vsel %vm1091, %v1087, 1326507024
        %v1102 = vsel %vm1090, %v1084, %v1101
        %v1103 = vsel %vm1089, %v1100, %v1102
        %v1104 = vshll.u32 %v1064, 8
        %v1105 = vmul.u32.u64.compose %v1104, %v1103
        %v1106 = vextract.low.u32 %v1105
        %v1107 = vextract.high.u32 %v1105
        %v1108 = vmul.u32.u64.compose %v1104, %v1099
        %v1109 = vextract.low.u32 %v1108
        %v1110 = vextract.high.u32 %v1108
        %v1111 = vmul.u32 %v1104, %v1095
        %v1112 = vadd.s32 %v1107, %v1109
        %vm1113 = vc.u32 %v1107, %v1109
        %v1114 = vadd.s32 %v1110, 1
        %v1115 = vsel %vm1113, %v1114, %v1110
        %v1116 = vadd.s32 %v1111, %v1115
        %v1117 = vadd.s32 %v1116, 536870912
        %v1118 = vshrl.u32 %v1117, 30
        %v1119 = vshll.u32 %v1118, 30
        %v1120 = vsub.s32 %v1116, %v1119
        %vm1121 = vcmp.lt.s32.totalorder %v1120, 0
        %v1122 = vsub.s32 0, %v1120
        %v1123 = vsel %vm1121, %v1122, %v1120
        %v1124 = vclz %v1123
        %v1125 = vsub.s32 %v1124, 2
        %vm1126 = vcmp.gt.s32.totalorder 0, %v1125
        %v1127 = vsel %vm1126, 0, %v1125
        %v1128 = vsub.s32 32, %v1127
        %v1129 = vshll.u32 %v1120, %v1127
        %v1130 = vshrl.u32 %v1112, %v1128
        %v1131 = vor.u32 %v1129, %v1130
        %v1132 = vsub.s32 4294967266, %v1127
        %v1133 = vadd.s32 %v1132, 127
        %v1134 = vshll.u32 %v1133, 23
        %v1135 = vor.u32 4788187, %v1134
        %v1136 = vand.u32 2147483647, %v1135
        %v1138 = vcvt.s32.f32 %v1131
        %v1139 = vmul.f32 %v1138, %v1136
        %v1140 = vxor.u32 %v1139, 2147483648
        %v1141 = vsel %vm1058, %v1140, %v1139
        %v1142 = vsub.s32 4, %v1118
        %v1143 = vsel %vm1058, %v1142, %v1118
        %v1144 = vsel %vm1057, %v739, %v1141
        %v1145 = vsel %vm1057, 0, %v1143
        %v1146 = vcosq.f32.pop %v1144
        %v1147 = vsinq.f32.pop %v1144
        %vm1148 = vweird.f32 %v739
        %v1149 = vadd.s32 %v1145, 3
        %v1150 = vand.u32 %v1149, 3
        %vm1151 = vcmp.lt.s32.totalorder %v1150, 2
        %vm1152 = vcmp.eq.s32.totalorder %v1150, 0
        %v1153 = vxor.u32 %v1147, 2147483648
        %v1154 = vsel %vm1152, %v1146, %v1153
        %vm1155 = vcmp.eq.s32.totalorder %v1150, 2
        %v1156 = vxor.u32 %v1146, 2147483648
        %v1157 = vsel %vm1155, %v1156, %v1147
        %v1158 = vsel %vm1151, %v1154, %v1157
        %v1159 = vsel %vm1148, nan, %v1158
        %v1160 = vadd.f32 %v740, %v847
        %v1161 = vadd.f32 %v741, %v951
        %v1162 = vadd.f32 %v742, %v1055
        %v1163 = vadd.f32 %v743, %v1159
        %1164 = vst [vmem:[%s404] sm:$0xff] %v1160
        %1165 = vst [vmem:[%s404 + $0x8] sm:$0xff] %v1161
        %1166 = vst [vmem:[%s404 + $0x10] sm:$0xff] %v1162
        %1167 = vst [vmem:[%s404 + $0x18] sm:$0xff] %v1163
        %s1168 = sand.u32 %s197, 1
        %s1169 = scalar_lea.sflag [#allocation4], %s1168
        %s1170 = sand.u32 %s197, 1
        %s1171 = smul.addr %s1170, 32
        %s1172 = scalar_lea.vmem [#allocation13], %s1171
        // Predicated region
        $region69: #{tpu_custom_call.1} parent=43 // pred_check
          %p1173 = pneg %p207
        $region70: #{tpu_custom_call.1} parent=43 // pred_check_branch
          %1175 = sbr.rel (%p1173) target = $region72
        $region71: #{tpu_custom_call.1} parent=43 // pred_region
          %s1177 = ssub.s32 512, 512
          %1178 = vsyncadd %s1169, %s1177
          %s1179 = smul.addr %s33, 4
          %s1180 = smul.addr %s32, 4
          %s1181 = sadd.s32 %s1179, %s1180
          %s1182 = smul.addr %s1181, 128
          %s1183 = scalar_lea.hbm %s6, %s1182
          %s1185 = sshll.u32 %s1172, 4
          %s1186 = int_to_ptr.vmem [resolvable:$true] %s1185
          %1188 = dma.vmem_to_hbm [thread:$0]  %s1186, 512, %s1183, %s1169
        $region72: #{tpu_custom_call.1} parent=43 // pred_fallthru
          _
      $region44: #{tpu_custom_call.1} parent=5 // pred_fallthru
        _
      %p1189 = scmp.le.s32.totalorder 2, %s23
      // Predicated region
      $region73: #{tpu_custom_call.1} parent=5 // pred_check
        %p1190 = pneg %p1189
      $region74: #{tpu_custom_call.1} parent=5 // pred_check_branch
        %1192 = sbr.rel (%p1190) target = $region76
      $region75: #{tpu_custom_call.1} parent=5 // pred_region
        %s1193 = ssub.s32 %s23, 2
        // Predicated region
        $region77: #{tpu_custom_call.1} parent=75 // pred_check
          %p1194 = pneg %p213
        $region78: #{tpu_custom_call.1} parent=75 // pred_check_branch
          %1196 = sbr.rel (%p1194) target = $region80
        $region79: #{tpu_custom_call.1} parent=75 // pred_region
          %s1197 = sand.u32 %s198, 1
          %s1198 = scalar_lea.sflag [#allocation4], %s1197
          %s1199 = sand.u32 %s198, 1
          %s1200 = smul.addr %s1199, 32
          %s1201 = scalar_lea.vmem [#allocation13], %s1200
          %1202 = dma.done %s1198, 512
        $region80: #{tpu_custom_call.1} parent=75 // pred_fallthru
          _
      $region76: #{tpu_custom_call.1} parent=5 // pred_fallthru
        _
    $region6: #{tpu_custom_call.1} parent=1 // loop_footer
      %s27 = sadd.s32 1, %s23
    $region7: #{tpu_custom_call.1} parent=1 // loop_footer_branch
      %22 = sbr.rel target = $region3
    $region8: #{tpu_custom_call.1} parent=1 // loop_exit
      _
    %1203 = vsyncpa [#allocation3], 1
    %s1204 = scalar_lea.sflag [#allocation3], 1
    %1205 = vsyncpa %s1204, 1
    %1206 = vsyncpa [#allocation6], 1
    %1207 = vsyncpa [#allocation9], 1
    %s1208 = scalar_lea.sflag [#allocation9], 1
    %1209 = vsyncpa %s1208, 1
    %1210 = vsyncpa [#allocation12], 1
    %s1211 = scalar_lea.sflag [#allocation12], 1
    %1212 = vsyncpa %s1211, 1
    %1213 = vsyncpa [#allocation4], 1
    %s1214 = scalar_lea.sflag [#allocation4], 1
    %1215 = vsyncpa %s1214, 1

</llo_original>
